<compile_context>
chip_gen: v7x
topology: tpu7x:2x2x1
jax: 0.10.0
libtpu: 0.0.40
codegen_flags: <defaults>
</compile_context>

<pallas_src>
import numpy as np
import jax
import jax.numpy as jnp
from jax.experimental import pallas as pl
from jax.experimental.pallas import tpu as pltpu


def _round_up(x, m):
    return (x + m - 1) // m * m


# ----------------------------------------------------------------------------
# Deterministic parameter init (mirrors module __init__ / init_weights)
# ----------------------------------------------------------------------------
def _get_1d_sincos(embed_dim, pos):
    omega = np.arange(embed_dim // 2, dtype=np.float64)
    omega /= embed_dim / 2.0
    omega = 1.0 / 10000 ** omega
    pos = pos.reshape(-1)
    out = np.einsum("m,d->md", pos, omega)
    return np.concatenate([np.sin(out), np.cos(out)], axis=1)


def get_2d_sincos_pos_embed(embed_dim, grid_size, cls_token=False):
    grid_h = np.arange(grid_size, dtype=np.float64)
    grid_w = np.arange(grid_size, dtype=np.float64)
    grid = np.meshgrid(grid_w, grid_h)  # w goes first (MAE convention)
    grid = np.stack(grid, axis=0).reshape([2, 1, grid_size, grid_size])
    emb_h = _get_1d_sincos(embed_dim // 2, grid[0])
    emb_w = _get_1d_sincos(embed_dim // 2, grid[1])
    pos = np.concatenate([emb_h, emb_w], axis=1)
    if cls_token:
        pos = np.concatenate([np.zeros([1, embed_dim]), pos], axis=0)
    return pos.astype(np.float32)


# ----------------------------------------------------------------------------
# Pallas kernel
# ----------------------------------------------------------------------------
def _make_decoder_kernel(compute_dtype):
    def _decoder_kernel(x_ref, w_ref, b_ref, mt_ref, sel_ref, pos_ref, out_ref):
        # x_ref:   (BB*L1p, E)   padded encoder tokens for BB batches, flattened batch-major
        # w_ref:   (E, Dp)       decoder_embed weight (input-major), D padded to 128
        # b_ref:   (1, Dp)       decoder_embed bias
        # mt_ref:  (1, Dp)       mask token
        # sel_ref: (BB, N+1, 1)  int32 gather selector: 0 -> cls, ids+1 -> kept token, L1p -> masked
        # pos_ref: (N+1, Dp)     decoder_pos_embed
        # out_ref: (BB, N+1, Dp)
        BB, Np1, Dp = out_ref.shape
        L1p = x_ref.shape[0] // BB

        # decoder_embed for all BB batches in one MXU matmul (M = BB*L1p fills the MXU).
        y = jnp.dot(x_ref[...].astype(compute_dtype),
                    w_ref[...].astype(compute_dtype),
                    preferred_element_type=jnp.float32) + b_ref[...]        # (BB*L1p, Dp) f32

        pos = pos_ref[...]                                                  # (N+1, Dp)
        mt = mt_ref[...]                                                    # (1, Dp)
        col = jax.lax.broadcasted_iota(jnp.int32, (Np1, Dp * 0 + L1p), 1)   # (N+1, L1p) col idx

        # Small unrolled per-batch gather: one (N+1, L1p) @ (L1p, Dp) MXU call each.
        for bb in range(BB):
            sel = sel_ref[bb]                                               # (N+1, 1) int32
            onehot = (col == sel).astype(compute_dtype)                     # (N+1, L1p), rows of
            #                                                                 masked tokens are all-zero
            y_b = y[bb * L1p:(bb + 1) * L1p, :].astype(compute_dtype)       # 8-aligned static slice
            gathered = jnp.dot(onehot, y_b,
                               preferred_element_type=jnp.float32)          # (N+1, Dp)
            is_masked = (sel >= L1p).astype(jnp.float32)                    # (N+1, 1)
            out_ref[bb] = (gathered + is_masked * mt + pos).astype(out_ref.dtype)

    return _decoder_kernel


def vit_embedding_decoder(x_tuple, params, *, compute_dtype=jnp.float32, block_b=None):
    x_inp, mask, ids_restore, imgs = x_tuple
    B, L1, E = x_inp.shape
    N = ids_restore.shape[1]
    D = params["w"].shape[1]

    L1p = _round_up(L1, 8)          # sublane-aligned token count per batch
    Dp = _round_up(D, 128)          # lane-aligned feature dim (unmasked stores, aligned MXU N)
    if block_b is None:             # largest divisor of B that is <= 8
        block_b = max(d for d in range(1, min(B, 8) + 1) if B % d == 0)
    BB = block_b
    assert B % BB == 0

    # wrapper-side layout prep (cheap XLA pads / free reshape of contiguous HBM)
    x2d = jnp.pad(x_inp, ((0, 0), (0, L1p - L1), (0, 0))).reshape(B * L1p, E)
    w_p = jnp.pad(params["w"], ((0, 0), (0, Dp - D)))
    b_p = jnp.pad(params["b"], ((0, 0), (0, Dp - D)))
    mt_p = jnp.pad(params["mask_token"], ((0, 0), (0, Dp - D)))
    pos_p = jnp.pad(params["pos_embed"], ((0, 0), (0, Dp - D)))

    # gather selector over the embedded tokens y of one batch (length L1p):
    #   row 0 (cls) -> column 0; restored token i kept -> column ids[i]+1; masked -> L1p (no match)
    ids = ids_restore.astype(jnp.int32)                                     # (B, N)
    sel_body = jnp.where(ids < (L1 - 1), ids + 1, jnp.int32(L1p))           # (B, N)
    sel = jnp.concatenate([jnp.zeros((B, 1), jnp.int32), sel_body], axis=1)[..., None]  # (B, N+1, 1)

    flops = 2 * B * L1p * E * Dp + 2 * B * (N + 1) * L1p * Dp
    bytes_accessed = 4 * (B * L1p * E + E * Dp + 2 * Dp + (N + 1) * Dp
                          + B * (N + 1) + B * (N + 1) * Dp)

    out_p = pl.pallas_call(
        _make_decoder_kernel(compute_dtype),
        out_shape=jax.ShapeDtypeStruct((B, N + 1, Dp), x_inp.dtype),
        grid_spec=pltpu.PrefetchScalarGridSpec(
            num_scalar_prefetch=0,
            grid=(B // BB,),
            in_specs=[
                pl.BlockSpec((BB * L1p, E), lambda g: (g, 0)),       # x (flattened, padded)
                pl.BlockSpec((E, Dp), lambda g: (0, 0)),             # weight (resident)
                pl.BlockSpec((1, Dp), lambda g: (0, 0)),             # bias
                pl.BlockSpec((1, Dp), lambda g: (0, 0)),             # mask token
                pl.BlockSpec((BB, N + 1, 1), lambda g: (g, 0, 0)),   # gather selector
                pl.BlockSpec((N + 1, Dp), lambda g: (0, 0)),         # pos embed (resident)
            ],
            out_specs=pl.BlockSpec((BB, N + 1, Dp), lambda g: (g, 0, 0)),
        ),
        compiler_params=pltpu.CompilerParams(dimension_semantics=("parallel",)),
        cost_estimate=pl.CostEstimate(flops=flops, transcendentals=0,
                                      bytes_accessed=bytes_accessed),
    )(x2d, w_p, b_p, mt_p, sel, pos_p)

    out = out_p[:, :, :D]
    # module returns (x, mask, ids_restore, imgs); only x is transformed
    return out, mask, ids_restore, imgs


# ----------------------------------------------------------------------------
# Pure-JAX reference (module semantics; compute_dtype mirrors kernel matmul precision)
# ----------------------------------------------------------------------------
def reference(x_tuple, params, compute_dtype=jnp.float32):
    x_inp, mask, ids_restore, imgs = x_tuple
    y = jnp.dot(x_inp.astype(compute_dtype), params["w"].astype(compute_dtype),
                preferred_element_type=jnp.float32) + params["b"]
    y = y.astype(compute_dtype).astype(jnp.float32)   # matches kernel's gather-input cast
    B, L1, D = y.shape
    N = ids_restore.shape[1]
    mask_tokens = jnp.broadcast_to(params["mask_token"][None], (B, N - (L1 - 1), D))
    x_ = jnp.concatenate([y[:, 1:, :], mask_tokens], axis=1)
    x_ = jnp.take_along_axis(x_, ids_restore[..., None].astype(jnp.int32), axis=1)
    out = jnp.concatenate([y[:, :1, :], x_], axis=1) + params["pos_embed"][None]
    return out, mask, ids_restore, imgs


if __name__ == "__main__":
    # small, forward-consistent shapes
    B = 2
    patch_size = 2
    in_chans = 3
    embed_dim = 32          # E
    decoder_embed_dim = 64  # D (padded to 128 inside the wrapper)
    grid_size = 4
    num_patches = grid_size * grid_size  # N = 16
    img_size = grid_size * patch_size    # 8
    len_keep = num_patches // 2          # 8 kept patches -> x_inp has 9 tokens (cls + kept)

    key = jax.random.PRNGKey(0)
    k1, k2, k3, k4, k5 = jax.random.split(key, 5)

    # inputs
    x_inp = jax.random.normal(k1, (B, len_keep + 1, embed_dim), jnp.float32)
    noise = jax.random.uniform(k2, (B, num_patches))
    ids_shuffle = jnp.argsort(noise, axis=1)
    ids_restore = jnp.argsort(ids_shuffle, axis=1).astype(jnp.int32)
    mask = jnp.ones((B, num_patches), jnp.float32).at[:, :len_keep].set(0.0)
    mask = jnp.take_along_axis(mask, ids_restore, axis=1)
    imgs = jax.random.normal(k3, (B, in_chans, img_size, img_size), jnp.float32)

    # parameters (deterministic): xavier-uniform Linear weight, zero bias,
    # normal(std=0.02) mask token, fixed 2d sin-cos pos embed.
    bound = float(np.sqrt(6.0 / (embed_dim + decoder_embed_dim)))
    params = {
        "w": jax.random.uniform(k4, (embed_dim, decoder_embed_dim), jnp.float32, -bound, bound),
        "b": jnp.zeros((1, decoder_embed_dim), jnp.float32),
        "mask_token": 0.02 * jax.random.normal(k5, (1, decoder_embed_dim), jnp.float32),
        "pos_embed": jnp.asarray(get_2d_sincos_pos_embed(decoder_embed_dim, grid_size, cls_token=True)),
    }
    # TODO(synk): decoder_norm / decoder_pred are declared in __init__ but unused in forward; omitted.

    x_tuple = (x_inp, mask, ids_restore, imgs)

    # f32 path — exact module semantics
    out, mask_o, ids_o, imgs_o = vit_embedding_decoder(x_tuple, params, compute_dtype=jnp.float32)
    out = jax.block_until_ready(out)
    ref_out, _, _, _ = reference(x_tuple, params, compute_dtype=jnp.float32)
    assert out.shape == (B, num_patches + 1, decoder_embed_dim)
    assert np.allclose(np.asarray(out), np.asarray(ref_out), rtol=1e-5, atol=1e-5)

    # bf16-matmul path (v6e/v7x MXU fast path; f32 accumulation) — compared against a
    # precision-matched reference so the structural check stays tight.
    out_bf, _, _, _ = vit_embedding_decoder(x_tuple, params, compute_dtype=jnp.bfloat16)
    out_bf = jax.block_until_ready(out_bf)
    ref_bf, _, _, _ = reference(x_tuple, params, compute_dtype=jnp.bfloat16)
    assert np.allclose(np.asarray(out_bf), np.asarray(ref_bf), rtol=1e-4, atol=1e-4)

    print("KERNEL_OK")
</pallas_src>

<mosaic_0001>
module attributes {stable_mosaic.version = 11 : i64} {
  func.func @_decoder_kernel(%arg0: i32, %arg1: memref<32x32xf32, #tpu.memory_space<vmem>>, %arg2: memref<32x128xf32, #tpu.memory_space<vmem>>, %arg3: memref<1x128xf32, #tpu.memory_space<vmem>>, %arg4: memref<1x128xf32, #tpu.memory_space<vmem>>, %arg5: memref<2x17x1xi32, #tpu.memory_space<vmem>>, %arg6: memref<17x128xf32, #tpu.memory_space<vmem>>, %arg7: memref<2x17x128xf32, #tpu.memory_space<vmem>>) attributes {dimension_semantics = [#tpu.dimension_semantics<parallel>], iteration_bounds = array<i64: 1>, scalar_prefetch = 0 : i64, scratch_operands = 0 : i64, tpu.core_type = #tpu.core_type<tc>, window_params = [{transform_indices = @transform_0, window_bounds = array<i64: 32, 32>}, {pipeline_mode = #tpu.pipeline_mode<synchronous>, transform_indices = @transform_1, window_bounds = array<i64: 32, 128>}, {pipeline_mode = #tpu.pipeline_mode<synchronous>, transform_indices = @transform_2, window_bounds = array<i64: 1, 128>}, {pipeline_mode = #tpu.pipeline_mode<synchronous>, transform_indices = @transform_3, window_bounds = array<i64: 1, 128>}, {transform_indices = @transform_4, window_bounds = array<i64: 2, 17, 1>}, {pipeline_mode = #tpu.pipeline_mode<synchronous>, transform_indices = @transform_5, window_bounds = array<i64: 17, 128>}, {transform_indices = @transform_6, window_bounds = array<i64: 2, 17, 128>}]} {
    %c0 = arith.constant 0 : index
    %c0_0 = arith.constant 0 : index
    %0 = vector.load %arg1[%c0, %c0_0] : memref<32x32xf32, #tpu.memory_space<vmem>>, vector<32x32xf32>
    %c0_1 = arith.constant 0 : index
    %c0_2 = arith.constant 0 : index
    %1 = vector.load %arg2[%c0_1, %c0_2] : memref<32x128xf32, #tpu.memory_space<vmem>>, vector<32x128xf32>
    %cst = arith.constant dense<0.000000e+00> : vector<32x128xf32>
    %2 = tpu.matmul %0, %1, %cst {dimension_numbers = #tpu.dot_dimension_numbers<[1], [0], [0], [1], [0, 0, 1, 1], [], []>} : vector<32x32xf32>, vector<32x128xf32>, vector<32x128xf32> -> vector<32x128xf32>
    %c0_3 = arith.constant 0 : index
    %c0_4 = arith.constant 0 : index
    %3 = vector.load %arg3[%c0_3, %c0_4] : memref<1x128xf32, #tpu.memory_space<vmem>>, vector<1x128xf32>
    %4 = vector.broadcast %3 : vector<1x128xf32> to vector<32x128xf32>
    %5 = arith.addf %2, %4 : vector<32x128xf32>
    %c0_5 = arith.constant 0 : index
    %c0_6 = arith.constant 0 : index
    %6 = vector.load %arg6[%c0_5, %c0_6] : memref<17x128xf32, #tpu.memory_space<vmem>>, vector<17x128xf32>
    %c0_7 = arith.constant 0 : index
    %c0_8 = arith.constant 0 : index
    %7 = vector.load %arg4[%c0_7, %c0_8] : memref<1x128xf32, #tpu.memory_space<vmem>>, vector<1x128xf32>
    %8 = tpu.iota {dimensions = array<i32: 1>} : vector<17x16xi32>
    %c0_9 = arith.constant 0 : index
    %c0_10 = arith.constant 0 : index
    %c0_11 = arith.constant 0 : index
    %9 = vector.load %arg5[%c0_9, %c0_10, %c0_11] : memref<2x17x1xi32, #tpu.memory_space<vmem>>, vector<1x17x1xi32>
    %10 = vector.shape_cast %9 : vector<1x17x1xi32> to vector<17x1xi32>
    %11 = vector.broadcast %10 : vector<17x1xi32> to vector<17x16xi32>
    %12 = arith.cmpi eq, %8, %11 : vector<17x16xi32>
    %13 = arith.extui %12 : vector<17x16xi1> to vector<17x16xi32>
    %14 = arith.sitofp %13 : vector<17x16xi32> to vector<17x16xf32>
    %15 = vector.extract_strided_slice %5 {offsets = [0, 0], sizes = [16, 128], strides = [1, 1]} : vector<32x128xf32> to vector<16x128xf32>
    %cst_12 = arith.constant dense<0.000000e+00> : vector<17x128xf32>
    %16 = tpu.matmul %14, %15, %cst_12 {dimension_numbers = #tpu.dot_dimension_numbers<[1], [0], [0], [1], [0, 0, 1, 1], [], []>} : vector<17x16xf32>, vector<16x128xf32>, vector<17x128xf32> -> vector<17x128xf32>
    %c16_i32 = arith.constant 16 : i32
    %17 = vector.broadcast %c16_i32 : i32 to vector<17x1xi32>
    %18 = arith.cmpi sge, %10, %17 : vector<17x1xi32>
    %19 = arith.extui %18 : vector<17x1xi1> to vector<17x1xi32>
    %20 = arith.sitofp %19 : vector<17x1xi32> to vector<17x1xf32>
    %21 = vector.broadcast %20 : vector<17x1xf32> to vector<17x128xf32>
    %22 = vector.broadcast %7 : vector<1x128xf32> to vector<17x128xf32>
    %23 = arith.mulf %21, %22 : vector<17x128xf32>
    %24 = arith.addf %16, %23 : vector<17x128xf32>
    %25 = arith.addf %24, %6 : vector<17x128xf32>
    %c0_13 = arith.constant 0 : index
    %c0_14 = arith.constant 0 : index
    %c0_15 = arith.constant 0 : index
    %26 = vector.load %arg7[%c0_13, %c0_14, %c0_15] : memref<2x17x128xf32, #tpu.memory_space<vmem>>, vector<1x17x128xf32>
    %27 = vector.shape_cast %26 : vector<1x17x128xf32> to vector<17x128xf32>
    %28 = vector.shape_cast %25 : vector<17x128xf32> to vector<1x17x128xf32>
    tpu.vector_store %arg7[%c0_13, %c0_14, %c0_15], %28 {strides = array<i32>} : memref<2x17x128xf32, #tpu.memory_space<vmem>>, vector<1x17x128xf32>,
    %c1 = arith.constant 1 : index
    %c0_16 = arith.constant 0 : index
    %c0_17 = arith.constant 0 : index
    %29 = vector.load %arg5[%c1, %c0_16, %c0_17] : memref<2x17x1xi32, #tpu.memory_space<vmem>>, vector<1x17x1xi32>
    %30 = vector.shape_cast %29 : vector<1x17x1xi32> to vector<17x1xi32>
    %31 = vector.broadcast %30 : vector<17x1xi32> to vector<17x16xi32>
    %32 = arith.cmpi eq, %8, %31 : vector<17x16xi32>
    %33 = arith.extui %32 : vector<17x16xi1> to vector<17x16xi32>
    %34 = arith.sitofp %33 : vector<17x16xi32> to vector<17x16xf32>
    %35 = vector.extract_strided_slice %5 {offsets = [16, 0], sizes = [16, 128], strides = [1, 1]} : vector<32x128xf32> to vector<16x128xf32>
    %cst_18 = arith.constant dense<0.000000e+00> : vector<17x128xf32>
    %36 = tpu.matmul %34, %35, %cst_18 {dimension_numbers = #tpu.dot_dimension_numbers<[1], [0], [0], [1], [0, 0, 1, 1], [], []>} : vector<17x16xf32>, vector<16x128xf32>, vector<17x128xf32> -> vector<17x128xf32>
    %c16_i32_19 = arith.constant 16 : i32
    %37 = vector.broadcast %c16_i32_19 : i32 to vector<17x1xi32>
    %38 = arith.cmpi sge, %30, %37 : vector<17x1xi32>
    %39 = arith.extui %38 : vector<17x1xi1> to vector<17x1xi32>
    %40 = arith.sitofp %39 : vector<17x1xi32> to vector<17x1xf32>
    %41 = vector.broadcast %40 : vector<17x1xf32> to vector<17x128xf32>
    %42 = vector.broadcast %7 : vector<1x128xf32> to vector<17x128xf32>
    %43 = arith.mulf %41, %42 : vector<17x128xf32>
    %44 = arith.addf %36, %43 : vector<17x128xf32>
    %45 = arith.addf %44, %6 : vector<17x128xf32>
    %c1_20 = arith.constant 1 : index
    %c0_21 = arith.constant 0 : index
    %c0_22 = arith.constant 0 : index
    %46 = vector.load %arg7[%c1_20, %c0_21, %c0_22] : memref<2x17x128xf32, #tpu.memory_space<vmem>>, vector<1x17x128xf32>
    %47 = vector.shape_cast %46 : vector<1x17x128xf32> to vector<17x128xf32>
    %48 = vector.shape_cast %45 : vector<17x128xf32> to vector<1x17x128xf32>
    tpu.vector_store %arg7[%c1_20, %c0_21, %c0_22], %48 {strides = array<i32>} : memref<2x17x128xf32, #tpu.memory_space<vmem>>, vector<1x17x128xf32>,
    return
  }
  func.func @transform_0(%arg0: i32) -> (i32, i32) {
    %c0_i32 = arith.constant 0 : i32
    %c0_i32_0 = arith.constant 0 : i32
    return %arg0, %c0_i32 : i32, i32
  }
  func.func @transform_1(%arg0: i32) -> (i32, i32) {
    %c0_i32 = arith.constant 0 : i32
    %c0_i32_0 = arith.constant 0 : i32
    %c0_i32_1 = arith.constant 0 : i32
    return %c0_i32, %c0_i32_0 : i32, i32
  }
  func.func @transform_2(%arg0: i32) -> (i32, i32) {
    %c0_i32 = arith.constant 0 : i32
    %c0_i32_0 = arith.constant 0 : i32
    %c0_i32_1 = arith.constant 0 : i32
    return %c0_i32, %c0_i32_0 : i32, i32
  }
  func.func @transform_3(%arg0: i32) -> (i32, i32) {
    %c0_i32 = arith.constant 0 : i32
    %c0_i32_0 = arith.constant 0 : i32
    %c0_i32_1 = arith.constant 0 : i32
    return %c0_i32, %c0_i32_0 : i32, i32
  }
  func.func @transform_4(%arg0: i32) -> (i32, i32, i32) {
    %c0_i32 = arith.constant 0 : i32
    %c0_i32_0 = arith.constant 0 : i32
    %c0_i32_1 = arith.constant 0 : i32
    return %arg0, %c0_i32, %c0_i32_0 : i32, i32, i32
  }
  func.func @transform_5(%arg0: i32) -> (i32, i32) {
    %c0_i32 = arith.constant 0 : i32
    %c0_i32_0 = arith.constant 0 : i32
    %c0_i32_1 = arith.constant 0 : i32
    return %c0_i32, %c0_i32_0 : i32, i32
  }
  func.func @transform_6(%arg0: i32) -> (i32, i32, i32) {
    %c0_i32 = arith.constant 0 : i32
    %c0_i32_0 = arith.constant 0 : i32
    %c0_i32_1 = arith.constant 0 : i32
    return %arg0, %c0_i32, %c0_i32_0 : i32, i32, i32
  }
}

</mosaic_0001>

<llo_original>
// kernel: tpu_custom_call.1
$region0: #{tpu_custom_call.1}
  #allocation0 [shape = 'u32[]', space=smem, size = 0x4, offset = 0x4, fixed_abs, tag = 'smem constant byte address 0x4 - core index']
  #allocation1 [shape = 'u32[144,128]{1,0:T(1,128)}', space=vmem, size = 0x12000, scoped, tag = 'internal scratch']
  %s0 = inlined_call_operand.vmem [shape: f32[32,32], index: 0, kind: input, shape index: {}]
  %s1 = inlined_call_operand.hbm [shape: f32[32,128], index: 1, kind: input, shape index: {}]
  %s2 = inlined_call_operand.vmem [shape: f32[1,128], index: 2, kind: input, shape index: {}]
  %s3 = inlined_call_operand.vmem [shape: f32[1,128], index: 3, kind: input, shape index: {}]
  %s4 = inlined_call_operand.vmem [shape: s32[2,17,1], index: 4, kind: input, shape index: {}]
  %s5 = inlined_call_operand.vmem [shape: f32[17,128], index: 5, kind: input, shape index: {}]
  %s6 = inlined_call_operand.vmem [shape: f32[2,17,128], index: 6, kind: output, shape index: {}]
  %s7 = sld [smem:[#allocation0]]
  $region38: #{tpu_custom_call.1} parent=0
    _
  %s9 = ssub.s32 1, %s7
  %s10 = scalar_select 0, %s9, %s7
  $region1: #{tpu_custom_call.1} parent=0
    #allocation2 [shape = 'u8[16384]{0}', space=vmem, size = 0x4000, scoped, tag = 'input window, operand 1, single buffered']
    #allocation3 [shape = 's32[1]{0}', space=sflag, size = 0x4, scoped, tag = 'scoped memory for tpu_custom_call.1']
    %11 = vsyncpa [#allocation3], 0
    // Predicated region
    $region2: #{tpu_custom_call.1} parent=1 // pred_check
      _
    $region3: #{tpu_custom_call.1} parent=1 // pred_check_branch
      %13 = sbr.rel (0) target = $region5
    $region4: #{tpu_custom_call.1} parent=1 // pred_region
      _
    $region5: #{tpu_custom_call.1} parent=1 // pred_fallthru
      _
    // Predicated region
    $region6: #{tpu_custom_call.1} parent=1 // pred_check
      _
    $region7: #{tpu_custom_call.1} parent=1 // pred_check_branch
      %15 = sbr.rel (0) target = $region9
    $region8: #{tpu_custom_call.1} parent=1 // pred_region
      %s17 = ssub.s32 512, 512
      %18 = vsyncadd [#allocation3], %s17
      %s19 = sshll.u32 [#allocation2], 4
      %s20 = int_to_ptr.vmem [resolvable:$true] %s19
      %25 = dma.hbm_to_vmem [thread:$0]  %s1, 512, %s20, [#allocation3], 128, 128, 8
    $region9: #{tpu_custom_call.1} parent=1 // pred_fallthru
      _
    // Predicated region
    $region10: #{tpu_custom_call.1} parent=1 // pred_check
      _
    $region11: #{tpu_custom_call.1} parent=1 // pred_check_branch
      %27 = sbr.rel (0) target = $region13
    $region12: #{tpu_custom_call.1} parent=1 // pred_region
      _
    $region13: #{tpu_custom_call.1} parent=1 // pred_fallthru
      _
    // Predicated region
    $region14: #{tpu_custom_call.1} parent=1 // pred_check
      _
    $region15: #{tpu_custom_call.1} parent=1 // pred_check_branch
      %29 = sbr.rel (0) target = $region17
    $region16: #{tpu_custom_call.1} parent=1 // pred_region
      _
    $region17: #{tpu_custom_call.1} parent=1 // pred_fallthru
      _
    // Predicated region
    $region18: #{tpu_custom_call.1} parent=1 // pred_check
      _
    $region19: #{tpu_custom_call.1} parent=1 // pred_check_branch
      %31 = sbr.rel (0) target = $region21
    $region20: #{tpu_custom_call.1} parent=1 // pred_region
      _
    $region21: #{tpu_custom_call.1} parent=1 // pred_fallthru
      _
    // Predicated region
    $region22: #{tpu_custom_call.1} parent=1 // pred_check
      _
    $region23: #{tpu_custom_call.1} parent=1 // pred_check_branch
      %33 = sbr.rel (0) target = $region25
    $region24: #{tpu_custom_call.1} parent=1 // pred_region
      _
    $region25: #{tpu_custom_call.1} parent=1 // pred_fallthru
      _
    // Predicated region
    $region26: #{tpu_custom_call.1} parent=1 // pred_check
      _
    $region27: #{tpu_custom_call.1} parent=1 // pred_check_branch
      %35 = sbr.rel (0) target = $region29
    $region28: #{tpu_custom_call.1} parent=1 // pred_region
      %36 = dma.done [#allocation3], 512
    $region29: #{tpu_custom_call.1} parent=1 // pred_fallthru
      _
    %v37 = vld [vmem:[%s0] sm:$0xff]
    %v38 = vld [vmem:[%s0 + $0x8] sm:$0xff]
    %v39 = vld [vmem:[%s0 + $0x10] sm:$0xff]
    %v40 = vld [vmem:[%s0 + $0x18] sm:$0xff]
    %v41 = vld [vmem:[#allocation2] sm:$0xff]
    %v42 = vld [vmem:[#allocation2 + $0x8] sm:$0xff]
    %v43 = vld [vmem:[#allocation2 + $0x10] sm:$0xff]
    %v44 = vld [vmem:[#allocation2 + $0x18] sm:$0xff]
    %v45 = vld [vmem:[%s2] sm:$0x1]
    %v47 = vlaneseq
    %v48 = vshrl.u32 %v47, 7
    %v49 = vsub.s32 0, %v48
    %v50 = vrot.slane %v45, %v49
    %vm52 = vcmask 261120
    %v54 = vsel %vm52, %v37, 0
    %v57 = vsel %vm52, %v38, 0
    %v60 = vsel %vm52, %v39, 0
    %v63 = vsel %vm52, %v40, 0
    %65 = vmatprep.subr.mxu0 0.0
    %66 = vmatpush1.msra.mxu0 %v41
    %67 = vmatprep.subr.mxu0 0.0
    %68 = vmatpush1.msra.mxu0 %v42
    %69 = vmatprep.subr.mxu0 0.0
    %70 = vmatpush1.msra.mxu0 %v43
    %71 = vmatprep.subr.mxu0 0.0
    %72 = vmatpush1.msra.mxu0 %v44
    %73 = vmatprep.subr.mxu0 0.0
    %74 = vmatpush1.msra.mxu0 0.0
    %75 = vmatprep.subr.mxu0 0.0
    %76 = vmatpush1.msra.mxu0 0.0
    %77 = vmatprep.subr.mxu0 0.0
    %78 = vmatpush1.msra.mxu0 0.0
    %79 = vmatprep.subr.mxu0 0.0
    %80 = vmatpush1.msra.mxu0 0.0
    %81 = vmatprep.subr.mxu0 0.0
    %82 = vmatpush1.msra.mxu0 0.0
    %83 = vmatprep.subr.mxu0 0.0
    %84 = vmatpush1.msra.mxu0 0.0
    %85 = vmatprep.subr.mxu0 0.0
    %86 = vmatpush1.msra.mxu0 0.0
    %87 = vmatprep.subr.mxu0 0.0
    %88 = vmatpush1.msra.mxu0 0.0
    %89 = vmatprep.subr.mxu0 0.0
    %90 = vmatpush1.msra.mxu0 0.0
    %91 = vmatprep.subr.mxu0 0.0
    %92 = vmatpush1.msra.mxu0 0.0
    %93 = vmatprep.subr.mxu0 0.0
    %94 = vmatpush1.msra.mxu0 0.0
    %95 = vmatprep.subr.mxu0 0.0
    %96 = vmatpush1.msra.mxu0 0.0
    %97 = vmatprep.subr.mxu0 0.0
    %98 = vmatpush1.msra.mxu0 0.0
    %99 = vmatprep.subr.mxu0 0.0
    %100 = vmatpush1.msra.mxu0 0.0
    %101 = vmatprep.subr.mxu0 0.0
    %102 = vmatpush1.msra.mxu0 0.0
    %103 = vmatprep.subr.mxu0 0.0
    %104 = vmatpush1.msra.mxu0 0.0
    %105 = vmatprep.subr.mxu0 0.0
    %106 = vmatpush1.msra.mxu0 0.0
    %107 = vmatprep.subr.mxu0 0.0
    %108 = vmatpush1.msra.mxu0 0.0
    %109 = vmatprep.subr.mxu0 0.0
    %110 = vmatpush1.msra.mxu0 0.0
    %111 = vmatprep.subr.mxu0 0.0
    %112 = vmatpush1.msra.mxu0 0.0
    %113 = vmatprep.subr.mxu0 0.0
    %114 = vmatpush1.msra.mxu0 0.0
    %115 = vmatprep.subr.mxu0 0.0
    %116 = vmatpush1.msra.mxu0 0.0
    %117 = vmatprep.subr.mxu0 0.0
    %118 = vmatpush1.msra.mxu0 0.0
    %119 = vmatprep.subr.mxu0 0.0
    %120 = vmatpush1.msra.mxu0 0.0
    %121 = vmatprep.subr.mxu0 0.0
    %122 = vmatpush1.msra.mxu0 0.0
    %123 = vmatprep.subr.mxu0 0.0
    %124 = vmatpush1.msra.mxu0 0.0
    %125 = vmatprep.subr.mxu0 0.0
    %126 = vmatpush1.msra.mxu0 0.0
    %127 = vmatprep.subr.mxu0 0.0
    %128 = vmatpush1.msra.mxu0 0.0
    %129 = vmatprep.mubr.f32.mxu0 0.0
    %130 = vmatmul.mubr.f32.gmra.mrb[0].mxu0 %v54
    %v131 = vpop.f32.mrb[0].mxu0
    %v132 = vadd.f32 %v50, %v131
    %v133 = vpop.f32.mrb[0].mxu0
    %134 = vmatprep.mubr.f32.mxu0 0.0
    %135 = vmatmul.mubr.f32.gmra.mrb[0].mxu0 %v57
    %v136 = vpop.f32.mrb[0].mxu0
    %v137 = vadd.f32 %v50, %v136
    %v138 = vpop.f32.mrb[0].mxu0
    %139 = vmatprep.mubr.f32.mxu0 0.0
    %140 = vmatmul.mubr.f32.gmra.mrb[0].mxu0 %v60
    %v141 = vpop.f32.mrb[0].mxu0
    %v142 = vadd.f32 %v50, %v141
    %v143 = vpop.f32.mrb[0].mxu0
    %144 = vmatprep.mubr.f32.mxu0 0.0
    %145 = vmatmul.mubr.f32.gmra.mrb[0].mxu0 %v63
    %v146 = vpop.f32.mrb[0].mxu0
    %v147 = vadd.f32 %v50, %v146
    %v148 = vpop.f32.mrb[0].mxu0
    %149 = vdwg.mxu0
    %v150 = vld [vmem:[%s5] sm:$0xff]
    %v151 = vld [vmem:[%s5 + $0x8] sm:$0xff]
    %v152 = vld [vmem:[%s5 + $0x10] sm:$0x1]
    %v153 = vld [vmem:[%s3] sm:$0x1]
    %v154 = vlaneseq
    %v155 = vand.u32 %v154, 127
    %v156 = vld [vmem:[%s4] sm:$0xff]
    %v157 = vld [vmem:[%s4 + $0x8] sm:$0xff]
    %v158 = vld [vmem:[%s4 + $0x10] sm:$0x1]
    %159 = vset.pattern.permute.xlu0 0
    %160 = vperm.xlu0 %159, %v156
    %v161 = vpop.permute.xlu0 %160
    %162 = vset.pattern.permute.xlu0 0
    %163 = vperm.xlu0 %162, %v157
    %v164 = vpop.permute.xlu0 %163
    %165 = vset.pattern.permute.xlu0 0
    %166 = vperm.xlu0 %165, %v158
    %v167 = vpop.permute.xlu0 %166
    %vm168 = vcmp.eq.s32.totalorder %v155, %v161
    %vm169 = vcmp.eq.s32.totalorder %v155, %v164
    %vm170 = vcmp.eq.s32.totalorder %v155, %v167
    %v171 = vsel %vm168, 1, 0
    %v172 = vsel %vm169, 1, 0
    %v173 = vsel %vm170, 1, 0
    %v174 = vcvt.s32.f32 %v171
    %v175 = vcvt.s32.f32 %v172
    %v176 = vcvt.s32.f32 %v173
    %vm177 = vcmp.ge.s32.totalorder %v156, 16
    %vm178 = vcmp.ge.s32.totalorder %v157, 16
    %vm179 = vcmp.ge.s32.totalorder %v158, 16
    %v180 = vsel %vm177, 1, 0
    %v181 = vsel %vm178, 1, 0
    %v182 = vsel %vm179, 1, 0
    %v183 = vcvt.s32.f32 %v180
    %v184 = vcvt.s32.f32 %v181
    %v185 = vcvt.s32.f32 %v182
    %187 = vset.pattern.permute.xlu0 0
    %188 = vperm.xlu0 %187, %v183
    %v189 = vpop.permute.xlu0 %188
    %192 = vset.pattern.permute.xlu0 0
    %193 = vperm.xlu0 %192, %v184
    %v194 = vpop.permute.xlu0 %193
    %197 = vset.pattern.permute.xlu0 0
    %198 = vperm.xlu0 %197, %v185
    %v199 = vpop.permute.xlu0 %198
    %v202 = vlaneseq
    %v203 = vshrl.u32 %v202, 7
    %v204 = vsub.s32 0, %v203
    %v205 = vrot.slane %v153, %v204
    %v207 = vmul.f32 %v189, %v205
    %v208 = vmul.f32 %v194, %v205
    %v209 = vmul.f32 %v199, %v205
    %vm210 = vcmask 130048
    %v212 = vsel %vm210, %v174, 0
    %v215 = vsel %vm210, %v175, 0
    %v218 = vsel %vm210, %v176, 0
    %220 = vmatprep.subr.mxu0 0.0
    %221 = vmatpush1.msra.mxu0 %v132
    %222 = vmatprep.subr.mxu0 0.0
    %223 = vmatpush1.msra.mxu0 %v137
    %224 = vmatprep.subr.mxu0 0.0
    %225 = vmatpush1.msra.mxu0 0.0
    %226 = vmatprep.subr.mxu0 0.0
    %227 = vmatpush1.msra.mxu0 0.0
    %228 = vmatprep.subr.mxu0 0.0
    %229 = vmatpush1.msra.mxu0 0.0
    %230 = vmatprep.subr.mxu0 0.0
    %231 = vmatpush1.msra.mxu0 0.0
    %232 = vmatprep.subr.mxu0 0.0
    %233 = vmatpush1.msra.mxu0 0.0
    %234 = vmatprep.subr.mxu0 0.0
    %235 = vmatpush1.msra.mxu0 0.0
    %236 = vmatprep.subr.mxu0 0.0
    %237 = vmatpush1.msra.mxu0 0.0
    %238 = vmatprep.subr.mxu0 0.0
    %239 = vmatpush1.msra.mxu0 0.0
    %240 = vmatprep.subr.mxu0 0.0
    %241 = vmatpush1.msra.mxu0 0.0
    %242 = vmatprep.subr.mxu0 0.0
    %243 = vmatpush1.msra.mxu0 0.0
    %244 = vmatprep.subr.mxu0 0.0
    %245 = vmatpush1.msra.mxu0 0.0
    %246 = vmatprep.subr.mxu0 0.0
    %247 = vmatpush1.msra.mxu0 0.0
    %248 = vmatprep.subr.mxu0 0.0
    %249 = vmatpush1.msra.mxu0 0.0
    %250 = vmatprep.subr.mxu0 0.0
    %251 = vmatpush1.msra.mxu0 0.0
    %252 = vmatprep.subr.mxu0 0.0
    %253 = vmatpush1.msra.mxu0 0.0
    %254 = vmatprep.subr.mxu0 0.0
    %255 = vmatpush1.msra.mxu0 0.0
    %256 = vmatprep.subr.mxu0 0.0
    %257 = vmatpush1.msra.mxu0 0.0
    %258 = vmatprep.subr.mxu0 0.0
    %259 = vmatpush1.msra.mxu0 0.0
    %260 = vmatprep.subr.mxu0 0.0
    %261 = vmatpush1.msra.mxu0 0.0
    %262 = vmatprep.subr.mxu0 0.0
    %263 = vmatpush1.msra.mxu0 0.0
    %264 = vmatprep.subr.mxu0 0.0
    %265 = vmatpush1.msra.mxu0 0.0
    %266 = vmatprep.subr.mxu0 0.0
    %267 = vmatpush1.msra.mxu0 0.0
    %268 = vmatprep.subr.mxu0 0.0
    %269 = vmatpush1.msra.mxu0 0.0
    %270 = vmatprep.subr.mxu0 0.0
    %271 = vmatpush1.msra.mxu0 0.0
    %272 = vmatprep.subr.mxu0 0.0
    %273 = vmatpush1.msra.mxu0 0.0
    %274 = vmatprep.subr.mxu0 0.0
    %275 = vmatpush1.msra.mxu0 0.0
    %276 = vmatprep.subr.mxu0 0.0
    %277 = vmatpush1.msra.mxu0 0.0
    %278 = vmatprep.subr.mxu0 0.0
    %279 = vmatpush1.msra.mxu0 0.0
    %280 = vmatprep.subr.mxu0 0.0
    %281 = vmatpush1.msra.mxu0 0.0
    %282 = vmatprep.subr.mxu0 0.0
    %283 = vmatpush1.msra.mxu0 0.0
    %284 = vmatprep.mubr.f32.mxu0 0.0
    %285 = vmatmul.mubr.f32.gmra.mrb[0].mxu0 %v212
    %v286 = vpop.f32.mrb[0].mxu0
    %v287 = vadd.f32 %v207, %v286
    %v288 = vpop.f32.mrb[0].mxu0
    %289 = vmatprep.mubr.f32.mxu0 0.0
    %290 = vmatmul.mubr.f32.gmra.mrb[0].mxu0 %v215
    %v291 = vpop.f32.mrb[0].mxu0
    %v292 = vadd.f32 %v208, %v291
    %v293 = vpop.f32.mrb[0].mxu0
    %294 = vmatprep.mubr.f32.mxu0 0.0
    %295 = vmatmul.mubr.f32.gmra.mrb[0].mxu0 %v218
    %v296 = vpop.f32.mrb[0].mxu0
    %v297 = vadd.f32 %v209, %v296
    %v298 = vpop.f32.mrb[0].mxu0
    %299 = vdwg.mxu0
    %v300 = vadd.f32 %v287, %v150
    %v301 = vadd.f32 %v292, %v151
    %v302 = vadd.f32 %v297, %v152
    %303 = vst [vmem:[%s6] sm:$0xff] %v300
    %304 = vst [vmem:[%s6 + $0x8] sm:$0xff] %v301
    %305 = vst [vmem:[%s6 + $0x10] sm:$0x1] %v302
    %s306 = scalar_lea.vmem %s4, 24
    %v307 = vld [vmem:[%s306] sm:$0xff]
    %v308 = vld [vmem:[%s306 + $0x8] sm:$0xff]
    %v309 = vld [vmem:[%s306 + $0x10] sm:$0x1]
    %310 = vset.pattern.permute.xlu0 0
    %311 = vperm.xlu0 %310, %v307
    %v312 = vpop.permute.xlu0 %311
    %313 = vset.pattern.permute.xlu0 0
    %314 = vperm.xlu0 %313, %v308
    %v315 = vpop.permute.xlu0 %314
    %316 = vset.pattern.permute.xlu0 0
    %317 = vperm.xlu0 %316, %v309
    %v318 = vpop.permute.xlu0 %317
    %vm319 = vcmp.eq.s32.totalorder %v155, %v312
    %vm320 = vcmp.eq.s32.totalorder %v155, %v315
    %vm321 = vcmp.eq.s32.totalorder %v155, %v318
    %v322 = vsel %vm319, 1, 0
    %v323 = vsel %vm320, 1, 0
    %v324 = vsel %vm321, 1, 0
    %v325 = vcvt.s32.f32 %v322
    %v326 = vcvt.s32.f32 %v323
    %v327 = vcvt.s32.f32 %v324
    %vm328 = vcmp.ge.s32.totalorder %v307, 16
    %vm329 = vcmp.ge.s32.totalorder %v308, 16
    %vm330 = vcmp.ge.s32.totalorder %v309, 16
    %v331 = vsel %vm328, 1, 0
    %v332 = vsel %vm329, 1, 0
    %v333 = vsel %vm330, 1, 0
    %v334 = vcvt.s32.f32 %v331
    %v335 = vcvt.s32.f32 %v332
    %v336 = vcvt.s32.f32 %v333
    %338 = vset.pattern.permute.xlu0 0
    %339 = vperm.xlu0 %338, %v334
    %v340 = vpop.permute.xlu0 %339
    %343 = vset.pattern.permute.xlu0 0
    %344 = vperm.xlu0 %343, %v335
    %v345 = vpop.permute.xlu0 %344
    %348 = vset.pattern.permute.xlu0 0
    %349 = vperm.xlu0 %348, %v336
    %v350 = vpop.permute.xlu0 %349
    %v352 = vmul.f32 %v340, %v205
    %v353 = vmul.f32 %v345, %v205
    %v354 = vmul.f32 %v350, %v205
    %v356 = vsel %vm210, %v325, 0
    %v359 = vsel %vm210, %v326, 0
    %v362 = vsel %vm210, %v327, 0
    %364 = vmatprep.subr.mxu0 0.0
    %365 = vmatpush1.msra.mxu0 %v142
    %366 = vmatprep.subr.mxu0 0.0
    %367 = vmatpush1.msra.mxu0 %v147
    %368 = vmatprep.subr.mxu0 0.0
    %369 = vmatpush1.msra.mxu0 0.0
    %370 = vmatprep.subr.mxu0 0.0
    %371 = vmatpush1.msra.mxu0 0.0
    %372 = vmatprep.subr.mxu0 0.0
    %373 = vmatpush1.msra.mxu0 0.0
    %374 = vmatprep.subr.mxu0 0.0
    %375 = vmatpush1.msra.mxu0 0.0
    %376 = vmatprep.subr.mxu0 0.0
    %377 = vmatpush1.msra.mxu0 0.0
    %378 = vmatprep.subr.mxu0 0.0
    %379 = vmatpush1.msra.mxu0 0.0
    %380 = vmatprep.subr.mxu0 0.0
    %381 = vmatpush1.msra.mxu0 0.0
    %382 = vmatprep.subr.mxu0 0.0
    %383 = vmatpush1.msra.mxu0 0.0
    %384 = vmatprep.subr.mxu0 0.0
    %385 = vmatpush1.msra.mxu0 0.0
    %386 = vmatprep.subr.mxu0 0.0
    %387 = vmatpush1.msra.mxu0 0.0
    %388 = vmatprep.subr.mxu0 0.0
    %389 = vmatpush1.msra.mxu0 0.0
    %390 = vmatprep.subr.mxu0 0.0
    %391 = vmatpush1.msra.mxu0 0.0
    %392 = vmatprep.subr.mxu0 0.0
    %393 = vmatpush1.msra.mxu0 0.0
    %394 = vmatprep.subr.mxu0 0.0
    %395 = vmatpush1.msra.mxu0 0.0
    %396 = vmatprep.subr.mxu0 0.0
    %397 = vmatpush1.msra.mxu0 0.0
    %398 = vmatprep.subr.mxu0 0.0
    %399 = vmatpush1.msra.mxu0 0.0
    %400 = vmatprep.subr.mxu0 0.0
    %401 = vmatpush1.msra.mxu0 0.0
    %402 = vmatprep.subr.mxu0 0.0
    %403 = vmatpush1.msra.mxu0 0.0
    %404 = vmatprep.subr.mxu0 0.0
    %405 = vmatpush1.msra.mxu0 0.0
    %406 = vmatprep.subr.mxu0 0.0
    %407 = vmatpush1.msra.mxu0 0.0
    %408 = vmatprep.subr.mxu0 0.0
    %409 = vmatpush1.msra.mxu0 0.0
    %410 = vmatprep.subr.mxu0 0.0
    %411 = vmatpush1.msra.mxu0 0.0
    %412 = vmatprep.subr.mxu0 0.0
    %413 = vmatpush1.msra.mxu0 0.0
    %414 = vmatprep.subr.mxu0 0.0
    %415 = vmatpush1.msra.mxu0 0.0
    %416 = vmatprep.subr.mxu0 0.0
    %417 = vmatpush1.msra.mxu0 0.0
    %418 = vmatprep.subr.mxu0 0.0
    %419 = vmatpush1.msra.mxu0 0.0
    %420 = vmatprep.subr.mxu0 0.0
    %421 = vmatpush1.msra.mxu0 0.0
    %422 = vmatprep.subr.mxu0 0.0
    %423 = vmatpush1.msra.mxu0 0.0
    %424 = vmatprep.subr.mxu0 0.0
    %425 = vmatpush1.msra.mxu0 0.0
    %426 = vmatprep.subr.mxu0 0.0
    %427 = vmatpush1.msra.mxu0 0.0
    %428 = vmatprep.mubr.f32.mxu0 0.0
    %429 = vmatmul.mubr.f32.gmra.mrb[0].mxu0 %v356
    %v430 = vpop.f32.mrb[0].mxu0
    %v431 = vadd.f32 %v352, %v430
    %v432 = vpop.f32.mrb[0].mxu0
    %433 = vmatprep.mubr.f32.mxu0 0.0
    %434 = vmatmul.mubr.f32.gmra.mrb[0].mxu0 %v359
    %v435 = vpop.f32.mrb[0].mxu0
    %v436 = vadd.f32 %v353, %v435
    %v437 = vpop.f32.mrb[0].mxu0
    %438 = vmatprep.mubr.f32.mxu0 0.0
    %439 = vmatmul.mubr.f32.gmra.mrb[0].mxu0 %v362
    %v440 = vpop.f32.mrb[0].mxu0
    %v441 = vadd.f32 %v354, %v440
    %v442 = vpop.f32.mrb[0].mxu0
    %443 = vdwg.mxu0
    %v444 = vadd.f32 %v431, %v150
    %v445 = vadd.f32 %v436, %v151
    %v446 = vadd.f32 %v441, %v152
    %s447 = scalar_lea.vmem %s6, 24
    %448 = vst [vmem:[%s447] sm:$0xff] %v444
    %449 = vst [vmem:[%s447 + $0x8] sm:$0xff] %v445
    %450 = vst [vmem:[%s447 + $0x10] sm:$0x1] %v446
    // Predicated region
    $region30: #{tpu_custom_call.1} parent=1 // pred_check
      _
    $region31: #{tpu_custom_call.1} parent=1 // pred_check_branch
      %452 = sbr.rel (0) target = $region33
    $region32: #{tpu_custom_call.1} parent=1 // pred_region
      _
    $region33: #{tpu_custom_call.1} parent=1 // pred_fallthru
      _
    // Predicated region
    $region34: #{tpu_custom_call.1} parent=1 // pred_check
      _
    $region35: #{tpu_custom_call.1} parent=1 // pred_check_branch
      %454 = sbr.rel (0) target = $region37
    $region36: #{tpu_custom_call.1} parent=1 // pred_region
      _
    $region37: #{tpu_custom_call.1} parent=1 // pred_fallthru
      _
    %455 = vsyncpa [#allocation3], 1

</llo_original>
